<compile_context>
chip_gen: v7x
topology: tpu7x:2x2x1
jax: 0.10.0
libtpu: 0.0.40
codegen_flags: <defaults>
</compile_context>

<pallas_src>
import jax
import jax.numpy as jnp
from jax.experimental import pallas as pl
from jax.experimental.pallas import tpu as pltpu

HIDDEN = 256
LANE = 128


def _round_up(x, m):
    return (x + m - 1) // m * m


def sac_actor_kernel(x_ref, w1_ref, b1_ref, w2_ref, b2_ref, w3_ref, b3_ref, o_ref):
    # One batch tile of the MLP hot path.
    x = x_ref[...]                                                      # (TB, S) f32

    # Layer 1 in f32: K is tiny (state_dim), precision is essentially free.
    h1 = jnp.dot(x, w1_ref[...], preferred_element_type=jnp.float32) + b1_ref[...]
    h1 = jnp.maximum(h1, 0.0).astype(jnp.bfloat16)

    # Layers 2/3: bf16 MXU operands, f32 accumulation.
    h2 = jnp.dot(h1, w2_ref[...], preferred_element_type=jnp.float32) + b2_ref[...]
    h2 = jnp.maximum(h2, 0.0).astype(jnp.bfloat16)

    # w3/b3 are the mean head, zero-padded to a lane-dense 128 columns.
    y = jnp.dot(h2, w3_ref[...], preferred_element_type=jnp.float32) + b3_ref[...]
    o_ref[...] = jnp.tanh(y).astype(o_ref.dtype)                        # (TB, 128)


def prepare_params(params):
    """One-time prep: slice mean head, pad to lane width, cast big weights to bf16.

    Call once and reuse the result across forward() calls (caches the converts).
    """
    w1, b1 = params["w1"], params["b1"]
    w2, b2 = params["w2"], params["b2"]
    w3, b3 = params["w3"], params["b3"]

    act_dim = w3.shape[1] // 2
    out_pad = max(LANE, _round_up(act_dim, LANE))

    # forward() only uses the mean head; pad it to a lane-dense width.
    w3m = jnp.pad(w3[:, :act_dim], ((0, 0), (0, out_pad - act_dim)))
    b3m = jnp.pad(b3[:, :act_dim], ((0, 0), (0, out_pad - act_dim)))

    prepped = {
        "w1": w1.astype(jnp.float32),            # layer 1 stays f32
        "b1": b1.astype(jnp.float32),
        "w2": w2.astype(jnp.bfloat16),
        "b2": b2.astype(jnp.float32),
        "w3p": w3m.astype(jnp.bfloat16),
        "b3p": b3m.astype(jnp.float32),
        "act_dim": act_dim,                      # static python int
        "out_pad": out_pad,
    }
    # Materialize now so the converts never run on the hot path.
    for k, v in prepped.items():
        if isinstance(v, jax.Array):
            jax.block_until_ready(v)
    return prepped


def sac_actor_forward(states, prepped, *, tile_b=512):
    """states: (B, state_dim) float32.  prepped: output of prepare_params()."""
    w1, b1 = prepped["w1"], prepped["b1"]
    w2, b2 = prepped["w2"], prepped["b2"]
    w3p, b3p = prepped["w3p"], prepped["b3p"]
    act_dim = prepped["act_dim"]
    out_pad = prepped["out_pad"]

    batch, state_dim = states.shape

    # TB: multiple of 8 (sublane), collapses to one tile for small batches.
    tb = min(tile_b, _round_up(batch, 8))
    n_tiles = pl.cdiv(batch, tb)   # Pallas masks the partial last block's writeback

    flops = 2 * batch * (state_dim * HIDDEN + HIDDEN * HIDDEN + HIDDEN * out_pad)
    bytes_accessed = (
        states.size * 4 + batch * out_pad * 4
        + w1.size * 4 + w2.size * 2 + w3p.size * 2
        + (b1.size + b2.size + b3p.size) * 4
    )

    out = pl.pallas_call(
        sac_actor_kernel,
        out_shape=jax.ShapeDtypeStruct((batch, out_pad), states.dtype),
        grid_spec=pltpu.PrefetchScalarGridSpec(
            num_scalar_prefetch=0,
            grid=(n_tiles,),
            in_specs=[
                pl.BlockSpec((tb, state_dim), lambda i: (i, 0)),       # state tile
                pl.BlockSpec((state_dim, HIDDEN), lambda i: (0, 0)),   # w1 (resident, f32)
                pl.BlockSpec((1, HIDDEN), lambda i: (0, 0)),           # b1
                pl.BlockSpec((HIDDEN, HIDDEN), lambda i: (0, 0)),      # w2 (resident, bf16)
                pl.BlockSpec((1, HIDDEN), lambda i: (0, 0)),           # b2
                pl.BlockSpec((HIDDEN, out_pad), lambda i: (0, 0)),     # w3 mean head (padded)
                pl.BlockSpec((1, out_pad), lambda i: (0, 0)),          # b3 mean head (padded)
            ],
            out_specs=pl.BlockSpec((tb, out_pad), lambda i: (i, 0)),   # lane-dense output
        ),
        compiler_params=pltpu.CompilerParams(
            dimension_semantics=("parallel",),
        ),
        cost_estimate=pl.CostEstimate(
            flops=flops,
            transcendentals=batch * out_pad,
            bytes_accessed=bytes_accessed,
        ),
    )(states, w1, b1, w2, b2, w3p, b3p)

    return out[:, :act_dim]


def init_params(key, state_dim, action_dim):
    """Deterministic synthetic init (PyTorch-Linear-like uniform fan-in)."""
    ks = jax.random.split(key, 6)

    def lin(kw, kb, fan_in, fan_out):
        bound = 1.0 / (fan_in ** 0.5)
        w = jax.random.uniform(kw, (fan_in, fan_out), jnp.float32, -bound, bound)
        b = jax.random.uniform(kb, (1, fan_out), jnp.float32, -bound, bound)
        return w, b

    w1, b1 = lin(ks[0], ks[1], state_dim, HIDDEN)
    w2, b2 = lin(ks[2], ks[3], HIDDEN, HIDDEN)
    w3, b3 = lin(ks[4], ks[5], HIDDEN, 2 * action_dim)
    return {"w1": w1, "b1": b1, "w2": w2, "b2": b2, "w3": w3, "b3": b3}


def reference_forward(states, params):
    h1 = jnp.maximum(states @ params["w1"] + params["b1"], 0.0)
    h2 = jnp.maximum(h1 @ params["w2"] + params["b2"], 0.0)
    y = h2 @ params["w3"] + params["b3"]
    act_dim = params["w3"].shape[1] // 2
    return jnp.tanh(y[:, :act_dim])


if __name__ == "__main__":
    key = jax.random.PRNGKey(0)
    k_params, k1, k2, k3 = jax.random.split(key, 4)

    state_dim, action_dim = 16, 8
    params = init_params(k_params, state_dim, action_dim)
    prepped = prepare_params(params)   # one-time cast/slice/pad, cached

    # Small batch: single exact tile.
    batch = 8
    states = jax.random.normal(k1, (batch, state_dim), jnp.float32)
    out = jax.block_until_ready(sac_actor_forward(states, prepped))
    ref = reference_forward(states, params)
    assert out.shape == (batch, action_dim)
    assert jnp.allclose(out, ref, atol=3e-2, rtol=3e-2)

    # Non-multiple-of-8 batch: single partial tile (masked writeback path).
    batch2 = 130
    states2 = jax.random.normal(k2, (batch2, state_dim), jnp.float32)
    out2 = jax.block_until_ready(sac_actor_forward(states2, prepped))
    ref2 = reference_forward(states2, params)
    assert out2.shape == (batch2, action_dim)
    assert jnp.allclose(out2, ref2, atol=3e-2, rtol=3e-2)

    # Multi-tile batch: grid > 1 with a partial last block.
    batch3 = 1100
    states3 = jax.random.normal(k3, (batch3, state_dim), jnp.float32)
    out3 = jax.block_until_ready(sac_actor_forward(states3, prepped))
    ref3 = reference_forward(states3, params)
    assert out3.shape == (batch3, action_dim)
    assert jnp.allclose(out3, ref3, atol=3e-2, rtol=3e-2)
    assert jnp.all(jnp.isfinite(out3))

    print("KERNEL_OK")
</pallas_src>

<mosaic_0001>
module attributes {stable_mosaic.version = 11 : i64} {
  func.func @sac_actor_kernel(%arg0: i32, %arg1: memref<8x16xf32, #tpu.memory_space<vmem>>, %arg2: memref<16x256xf32, #tpu.memory_space<vmem>>, %arg3: memref<1x256xf32, #tpu.memory_space<vmem>>, %arg4: memref<256x256xbf16, #tpu.memory_space<vmem>>, %arg5: memref<1x256xf32, #tpu.memory_space<vmem>>, %arg6: memref<256x128xbf16, #tpu.memory_space<vmem>>, %arg7: memref<1x128xf32, #tpu.memory_space<vmem>>, %arg8: memref<8x128xf32, #tpu.memory_space<vmem>>) attributes {dimension_semantics = [#tpu.dimension_semantics<parallel>], iteration_bounds = array<i64: 1>, scalar_prefetch = 0 : i64, scratch_operands = 0 : i64, tpu.core_type = #tpu.core_type<tc>, window_params = [{transform_indices = @transform_0, window_bounds = array<i64: 8, 16>}, {pipeline_mode = #tpu.pipeline_mode<synchronous>, transform_indices = @transform_1, window_bounds = array<i64: 16, 256>}, {pipeline_mode = #tpu.pipeline_mode<synchronous>, transform_indices = @transform_2, window_bounds = array<i64: 1, 256>}, {pipeline_mode = #tpu.pipeline_mode<synchronous>, transform_indices = @transform_3, window_bounds = array<i64: 256, 256>}, {pipeline_mode = #tpu.pipeline_mode<synchronous>, transform_indices = @transform_4, window_bounds = array<i64: 1, 256>}, {pipeline_mode = #tpu.pipeline_mode<synchronous>, transform_indices = @transform_5, window_bounds = array<i64: 256, 128>}, {pipeline_mode = #tpu.pipeline_mode<synchronous>, transform_indices = @transform_6, window_bounds = array<i64: 1, 128>}, {transform_indices = @transform_7, window_bounds = array<i64: 8, 128>}]} {
    %c0 = arith.constant 0 : index
    %c0_0 = arith.constant 0 : index
    %0 = vector.load %arg1[%c0, %c0_0] : memref<8x16xf32, #tpu.memory_space<vmem>>, vector<8x16xf32>
    %c0_1 = arith.constant 0 : index
    %c0_2 = arith.constant 0 : index
    %1 = vector.load %arg2[%c0_1, %c0_2] : memref<16x256xf32, #tpu.memory_space<vmem>>, vector<16x256xf32>
    %cst = arith.constant dense<0.000000e+00> : vector<8x256xf32>
    %2 = tpu.matmul %0, %1, %cst {dimension_numbers = #tpu.dot_dimension_numbers<[1], [0], [0], [1], [0, 0, 1, 1], [], []>} : vector<8x16xf32>, vector<16x256xf32>, vector<8x256xf32> -> vector<8x256xf32>
    %c0_3 = arith.constant 0 : index
    %c0_4 = arith.constant 0 : index
    %3 = vector.load %arg3[%c0_3, %c0_4] : memref<1x256xf32, #tpu.memory_space<vmem>>, vector<1x256xf32>
    %4 = vector.broadcast %3 : vector<1x256xf32> to vector<8x256xf32>
    %5 = arith.addf %2, %4 : vector<8x256xf32>
    %cst_5 = arith.constant 0.000000e+00 : f32
    %6 = vector.broadcast %cst_5 : f32 to vector<8x256xf32>
    %7 = arith.maximumf %5, %6 : vector<8x256xf32>
    %8 = arith.truncf %7 : vector<8x256xf32> to vector<8x256xbf16>
    %c0_6 = arith.constant 0 : index
    %c0_7 = arith.constant 0 : index
    %9 = vector.load %arg4[%c0_6, %c0_7] : memref<256x256xbf16, #tpu.memory_space<vmem>>, vector<256x256xbf16>
    %cst_8 = arith.constant dense<0.000000e+00> : vector<8x256xf32>
    %10 = tpu.matmul %8, %9, %cst_8 {dimension_numbers = #tpu.dot_dimension_numbers<[1], [0], [0], [1], [0, 0, 1, 1], [], []>} : vector<8x256xbf16>, vector<256x256xbf16>, vector<8x256xf32> -> vector<8x256xf32>
    %c0_9 = arith.constant 0 : index
    %c0_10 = arith.constant 0 : index
    %11 = vector.load %arg5[%c0_9, %c0_10] : memref<1x256xf32, #tpu.memory_space<vmem>>, vector<1x256xf32>
    %12 = vector.broadcast %11 : vector<1x256xf32> to vector<8x256xf32>
    %13 = arith.addf %10, %12 : vector<8x256xf32>
    %cst_11 = arith.constant 0.000000e+00 : f32
    %14 = vector.broadcast %cst_11 : f32 to vector<8x256xf32>
    %15 = arith.maximumf %13, %14 : vector<8x256xf32>
    %16 = arith.truncf %15 : vector<8x256xf32> to vector<8x256xbf16>
    %c0_12 = arith.constant 0 : index
    %c0_13 = arith.constant 0 : index
    %17 = vector.load %arg6[%c0_12, %c0_13] : memref<256x128xbf16, #tpu.memory_space<vmem>>, vector<256x128xbf16>
    %cst_14 = arith.constant dense<0.000000e+00> : vector<8x128xf32>
    %18 = tpu.matmul %16, %17, %cst_14 {dimension_numbers = #tpu.dot_dimension_numbers<[1], [0], [0], [1], [0, 0, 1, 1], [], []>} : vector<8x256xbf16>, vector<256x128xbf16>, vector<8x128xf32> -> vector<8x128xf32>
    %c0_15 = arith.constant 0 : index
    %c0_16 = arith.constant 0 : index
    %19 = vector.load %arg7[%c0_15, %c0_16] : memref<1x128xf32, #tpu.memory_space<vmem>>, vector<1x128xf32>
    %20 = vector.broadcast %19 : vector<1x128xf32> to vector<8x128xf32>
    %21 = arith.addf %18, %20 : vector<8x128xf32>
    %22 = math.tanh %21 : vector<8x128xf32>
    %c0_17 = arith.constant 0 : index
    %c0_18 = arith.constant 0 : index
    %23 = vector.load %arg8[%c0_17, %c0_18] : memref<8x128xf32, #tpu.memory_space<vmem>>, vector<8x128xf32>
    tpu.vector_store %arg8[%c0_17, %c0_18], %22 {strides = array<i32>} : memref<8x128xf32, #tpu.memory_space<vmem>>, vector<8x128xf32>,
    return
  }
  func.func @transform_0(%arg0: i32) -> (i32, i32) {
    %c0_i32 = arith.constant 0 : i32
    %c0_i32_0 = arith.constant 0 : i32
    return %arg0, %c0_i32 : i32, i32
  }
  func.func @transform_1(%arg0: i32) -> (i32, i32) {
    %c0_i32 = arith.constant 0 : i32
    %c0_i32_0 = arith.constant 0 : i32
    %c0_i32_1 = arith.constant 0 : i32
    return %c0_i32, %c0_i32_0 : i32, i32
  }
  func.func @transform_2(%arg0: i32) -> (i32, i32) {
    %c0_i32 = arith.constant 0 : i32
    %c0_i32_0 = arith.constant 0 : i32
    %c0_i32_1 = arith.constant 0 : i32
    return %c0_i32, %c0_i32_0 : i32, i32
  }
  func.func @transform_3(%arg0: i32) -> (i32, i32) {
    %c0_i32 = arith.constant 0 : i32
    %c0_i32_0 = arith.constant 0 : i32
    %c0_i32_1 = arith.constant 0 : i32
    return %c0_i32, %c0_i32_0 : i32, i32
  }
  func.func @transform_4(%arg0: i32) -> (i32, i32) {
    %c0_i32 = arith.constant 0 : i32
    %c0_i32_0 = arith.constant 0 : i32
    %c0_i32_1 = arith.constant 0 : i32
    return %c0_i32, %c0_i32_0 : i32, i32
  }
  func.func @transform_5(%arg0: i32) -> (i32, i32) {
    %c0_i32 = arith.constant 0 : i32
    %c0_i32_0 = arith.constant 0 : i32
    %c0_i32_1 = arith.constant 0 : i32
    return %c0_i32, %c0_i32_0 : i32, i32
  }
  func.func @transform_6(%arg0: i32) -> (i32, i32) {
    %c0_i32 = arith.constant 0 : i32
    %c0_i32_0 = arith.constant 0 : i32
    %c0_i32_1 = arith.constant 0 : i32
    return %c0_i32, %c0_i32_0 : i32, i32
  }
  func.func @transform_7(%arg0: i32) -> (i32, i32) {
    %c0_i32 = arith.constant 0 : i32
    %c0_i32_0 = arith.constant 0 : i32
    return %arg0, %c0_i32 : i32, i32
  }
}

</mosaic_0001>

<llo_original>
// kernel: tpu_custom_call.1
$region0: #{tpu_custom_call.1}
  #allocation0 [shape = 'u32[]', space=smem, size = 0x4, offset = 0x4, fixed_abs, tag = 'smem constant byte address 0x4 - core index']
  #allocation1 [shape = 'u32[144,128]{1,0:T(1,128)}', space=vmem, size = 0x12000, scoped, tag = 'internal scratch']
  %s0 = inlined_call_operand.hbm [shape: f32[8,16], index: 0, kind: input, shape index: {}]
  %s1 = inlined_call_operand.hbm [shape: f32[16,256], index: 1, kind: input, shape index: {}]
  %s2 = inlined_call_operand.vmem [shape: f32[1,256], index: 2, kind: input, shape index: {}]
  %s3 = inlined_call_operand.hbm [shape: bf16[256,256], index: 3, kind: input, shape index: {}]
  %s4 = inlined_call_operand.vmem [shape: f32[1,256], index: 4, kind: input, shape index: {}]
  %s5 = inlined_call_operand.hbm [shape: bf16[256,128], index: 5, kind: input, shape index: {}]
  %s6 = inlined_call_operand.vmem [shape: f32[1,128], index: 6, kind: input, shape index: {}]
  %s7 = inlined_call_operand.hbm [shape: f32[8,128], index: 7, kind: output, shape index: {}]
  %s8 = sld [smem:[#allocation0]]
  $region54: #{tpu_custom_call.1} parent=0
    _
  %s10 = ssub.s32 1, %s8
  %s11 = scalar_select 0, %s10, %s8
  $region1: #{tpu_custom_call.1} parent=0
    #allocation2 [shape = 'u8[4096]{0}', space=vmem, size = 0x1000, scoped, tag = 'input window, operand 0, single buffered']
    #allocation3 [shape = 's32[1]{0}', space=sflag, size = 0x4, scoped, tag = 'scoped memory for tpu_custom_call.1']
    #allocation4 [shape = 's32[1]{0}', space=sflag, size = 0x4, scoped, tag = 'scoped memory for tpu_custom_call.1']
    #allocation5 [shape = 'u8[16384]{0}', space=vmem, size = 0x4000, scoped, tag = 'input window, operand 1, single buffered']
    #allocation6 [shape = 's32[1]{0}', space=sflag, size = 0x4, scoped, tag = 'scoped memory for tpu_custom_call.1']
    #allocation7 [shape = 'u8[131072]{0}', space=vmem, size = 0x20000, scoped, tag = 'input window, operand 3, single buffered']
    #allocation8 [shape = 'u8[65536]{0}', space=vmem, size = 0x10000, scoped, tag = 'input window, operand 5, single buffered']
    #allocation9 [shape = 's32[1]{0}', space=sflag, size = 0x4, scoped, tag = 'scoped memory for tpu_custom_call.1']
    #allocation10 [shape = 'u8[4096]{0}', space=vmem, size = 0x1000, scoped, tag = 'output window, operand 0, single buffered']
    %12 = vsyncpa [#allocation3], 0
    %13 = vsyncpa [#allocation6], 0
    %14 = vsyncpa [#allocation9], 0
    %15 = vsyncpa [#allocation4], 0
    // Predicated region
    $region2: #{tpu_custom_call.1} parent=1 // pred_check
      _
    $region3: #{tpu_custom_call.1} parent=1 // pred_check_branch
      %17 = sbr.rel (0) target = $region5
    $region4: #{tpu_custom_call.1} parent=1 // pred_region
      %s19 = ssub.s32 128, 128
      %20 = vsyncadd [#allocation3], %s19
      %s22 = sshll.u32 [#allocation2], 4
      %s23 = int_to_ptr.vmem [resolvable:$true] %s22
      %25 = dma.hbm_to_vmem [thread:$0]  %s0, 128, %s23, [#allocation3]
    $region5: #{tpu_custom_call.1} parent=1 // pred_fallthru
      _
    // Predicated region
    $region6: #{tpu_custom_call.1} parent=1 // pred_check
      _
    $region7: #{tpu_custom_call.1} parent=1 // pred_check_branch
      %27 = sbr.rel (0) target = $region9
    $region8: #{tpu_custom_call.1} parent=1 // pred_region
      %s29 = ssub.s32 512, 512
      %30 = vsyncadd [#allocation6], %s29
      %s31 = sshll.u32 [#allocation5], 4
      %s32 = int_to_ptr.vmem [resolvable:$true] %s31
      %37 = dma.hbm_to_vmem [thread:$0]  %s1, 512, %s32, [#allocation6], 256, 256, 16
    $region9: #{tpu_custom_call.1} parent=1 // pred_fallthru
      _
    // Predicated region
    $region10: #{tpu_custom_call.1} parent=1 // pred_check
      _
    $region11: #{tpu_custom_call.1} parent=1 // pred_check_branch
      %39 = sbr.rel (0) target = $region13
    $region12: #{tpu_custom_call.1} parent=1 // pred_region
      _
    $region13: #{tpu_custom_call.1} parent=1 // pred_fallthru
      _
    // Predicated region
    $region14: #{tpu_custom_call.1} parent=1 // pred_check
      _
    $region15: #{tpu_custom_call.1} parent=1 // pred_check_branch
      %41 = sbr.rel (0) target = $region17
    $region16: #{tpu_custom_call.1} parent=1 // pred_region
      %s43 = ssub.s32 4096, 4096
      %44 = vsyncadd [#allocation6], %s43
      %s45 = sshll.u32 [#allocation7], 4
      %s46 = int_to_ptr.vmem [resolvable:$true] %s45
      %51 = dma.hbm_to_vmem [thread:$0]  %s3, 4096, %s46, [#allocation6], 128, 128, 8
    $region17: #{tpu_custom_call.1} parent=1 // pred_fallthru
      _
    // Predicated region
    $region18: #{tpu_custom_call.1} parent=1 // pred_check
      _
    $region19: #{tpu_custom_call.1} parent=1 // pred_check_branch
      %53 = sbr.rel (0) target = $region21
    $region20: #{tpu_custom_call.1} parent=1 // pred_region
      _
    $region21: #{tpu_custom_call.1} parent=1 // pred_fallthru
      _
    // Predicated region
    $region22: #{tpu_custom_call.1} parent=1 // pred_check
      _
    $region23: #{tpu_custom_call.1} parent=1 // pred_check_branch
      %55 = sbr.rel (0) target = $region25
    $region24: #{tpu_custom_call.1} parent=1 // pred_region
      %s57 = ssub.s32 2048, 2048
      %58 = vsyncadd [#allocation9], %s57
      %s59 = sshll.u32 [#allocation8], 4
      %s60 = int_to_ptr.vmem [resolvable:$true] %s59
      %65 = dma.hbm_to_vmem [thread:$0]  %s5, 2048, %s60, [#allocation9], 64, 64, 4
    $region25: #{tpu_custom_call.1} parent=1 // pred_fallthru
      _
    // Predicated region
    $region26: #{tpu_custom_call.1} parent=1 // pred_check
      _
    $region27: #{tpu_custom_call.1} parent=1 // pred_check_branch
      %67 = sbr.rel (0) target = $region29
    $region28: #{tpu_custom_call.1} parent=1 // pred_region
      _
    $region29: #{tpu_custom_call.1} parent=1 // pred_fallthru
      _
    // Predicated region
    $region30: #{tpu_custom_call.1} parent=1 // pred_check
      _
    $region31: #{tpu_custom_call.1} parent=1 // pred_check_branch
      %69 = sbr.rel (0) target = $region33
    $region32: #{tpu_custom_call.1} parent=1 // pred_region
      %70 = dma.done [#allocation3], 128
    $region33: #{tpu_custom_call.1} parent=1 // pred_fallthru
      _
    // Predicated region
    $region34: #{tpu_custom_call.1} parent=1 // pred_check
      _
    $region35: #{tpu_custom_call.1} parent=1 // pred_check_branch
      %72 = sbr.rel (0) target = $region37
    $region36: #{tpu_custom_call.1} parent=1 // pred_region
      %73 = dma.done [#allocation6], 512
    $region37: #{tpu_custom_call.1} parent=1 // pred_fallthru
      _
    // Predicated region
    $region38: #{tpu_custom_call.1} parent=1 // pred_check
      _
    $region39: #{tpu_custom_call.1} parent=1 // pred_check_branch
      %75 = sbr.rel (0) target = $region41
    $region40: #{tpu_custom_call.1} parent=1 // pred_region
      %76 = dma.done [#allocation6], 4096
    $region41: #{tpu_custom_call.1} parent=1 // pred_fallthru
      _
    // Predicated region
    $region42: #{tpu_custom_call.1} parent=1 // pred_check
      _
    $region43: #{tpu_custom_call.1} parent=1 // pred_check_branch
      %78 = sbr.rel (0) target = $region45
    $region44: #{tpu_custom_call.1} parent=1 // pred_region
      %79 = dma.done [#allocation9], 2048
    $region45: #{tpu_custom_call.1} parent=1 // pred_fallthru
      _
    %v81 = vld [vmem:[#allocation2] sm:$0xff]
    %v82 = vld [vmem:[#allocation5] sm:$0xff]
    %v83 = vld [vmem:[#allocation5 + $0x8] sm:$0xff]
    %v84 = vld [vmem:[#allocation5 + $0x10] sm:$0xff]
    %v85 = vld [vmem:[#allocation5 + $0x18] sm:$0xff]
    %v86 = vld [vmem:[%s2] sm:$0x3]
    %v88 = vlaneseq
    %v89 = vshrl.u32 %v88, 7
    %v90 = vsub.s32 0, %v89
    %v91 = vrot.slane %v86, %v90
    %v92 = vlaneseq
    %v93 = vshrl.u32 %v92, 7
    %v94 = vsub.s32 1, %v93
    %v95 = vrot.slane %v86, %v94
    %vm98 = vcmask 130048
    %v100 = vsel %vm98, %v81, 0
    %102 = vmatprep.subr.mxu0 %v83
    %103 = vmatpush1.msra.mxu0 %v82
    %104 = vmatprep.subr.mxu0 %v85
    %105 = vmatpush1.msra.mxu0 %v84
    %106 = vmatprep.subr.mxu0 0.0
    %107 = vmatpush1.msra.mxu0 0.0
    %108 = vmatprep.subr.mxu0 0.0
    %109 = vmatpush1.msra.mxu0 0.0
    %110 = vmatprep.subr.mxu0 0.0
    %111 = vmatpush1.msra.mxu0 0.0
    %112 = vmatprep.subr.mxu0 0.0
    %113 = vmatpush1.msra.mxu0 0.0
    %114 = vmatprep.subr.mxu0 0.0
    %115 = vmatpush1.msra.mxu0 0.0
    %116 = vmatprep.subr.mxu0 0.0
    %117 = vmatpush1.msra.mxu0 0.0
    %118 = vmatprep.subr.mxu0 0.0
    %119 = vmatpush1.msra.mxu0 0.0
    %120 = vmatprep.subr.mxu0 0.0
    %121 = vmatpush1.msra.mxu0 0.0
    %122 = vmatprep.subr.mxu0 0.0
    %123 = vmatpush1.msra.mxu0 0.0
    %124 = vmatprep.subr.mxu0 0.0
    %125 = vmatpush1.msra.mxu0 0.0
    %126 = vmatprep.subr.mxu0 0.0
    %127 = vmatpush1.msra.mxu0 0.0
    %128 = vmatprep.subr.mxu0 0.0
    %129 = vmatpush1.msra.mxu0 0.0
    %130 = vmatprep.subr.mxu0 0.0
    %131 = vmatpush1.msra.mxu0 0.0
    %132 = vmatprep.subr.mxu0 0.0
    %133 = vmatpush1.msra.mxu0 0.0
    %134 = vmatprep.subr.mxu0 0.0
    %135 = vmatpush1.msra.mxu0 0.0
    %136 = vmatprep.subr.mxu0 0.0
    %137 = vmatpush1.msra.mxu0 0.0
    %138 = vmatprep.subr.mxu0 0.0
    %139 = vmatpush1.msra.mxu0 0.0
    %140 = vmatprep.subr.mxu0 0.0
    %141 = vmatpush1.msra.mxu0 0.0
    %142 = vmatprep.subr.mxu0 0.0
    %143 = vmatpush1.msra.mxu0 0.0
    %144 = vmatprep.subr.mxu0 0.0
    %145 = vmatpush1.msra.mxu0 0.0
    %146 = vmatprep.subr.mxu0 0.0
    %147 = vmatpush1.msra.mxu0 0.0
    %148 = vmatprep.subr.mxu0 0.0
    %149 = vmatpush1.msra.mxu0 0.0
    %150 = vmatprep.subr.mxu0 0.0
    %151 = vmatpush1.msra.mxu0 0.0
    %152 = vmatprep.subr.mxu0 0.0
    %153 = vmatpush1.msra.mxu0 0.0
    %154 = vmatprep.subr.mxu0 0.0
    %155 = vmatpush1.msra.mxu0 0.0
    %156 = vmatprep.subr.mxu0 0.0
    %157 = vmatpush1.msra.mxu0 0.0
    %158 = vmatprep.subr.mxu0 0.0
    %159 = vmatpush1.msra.mxu0 0.0
    %160 = vmatprep.subr.mxu0 0.0
    %161 = vmatpush1.msra.mxu0 0.0
    %162 = vmatprep.subr.mxu0 0.0
    %163 = vmatpush1.msra.mxu0 0.0
    %164 = vmatprep.subr.mxu0 0.0
    %165 = vmatpush1.msra.mxu0 0.0
    %166 = vmatprep.mubr.f32.mxu0 0.0
    %167 = vmatmul.mubr.f32.gmra.mrb[0].mxu0 %v100
    %v168 = vpop.f32.mrb[0].mxu0
    %v169 = vadd.f32 %v91, %v168
    %v170 = vpop.f32.mrb[0].mxu0
    %v171 = vadd.f32 %v95, %v170
    %172 = vdwg.mxu0
    %v173 = vmax.f32 %v169, 0.0
    %v174 = vmax.f32 %v171, 0.0
    %v175 = vpack.c.bf16 %v173, %v173
    %v176 = vpack.c.bf16 %v174, %v174
    %v177 = vld [vmem:[#allocation7] sm:$0xff]
    %v178 = vld [vmem:[#allocation7 + $0x8] sm:$0xff]
    %v179 = vld [vmem:[#allocation7 + $0x10] sm:$0xff]
    %v180 = vld [vmem:[#allocation7 + $0x18] sm:$0xff]
    %v181 = vld [vmem:[#allocation7 + $0x20] sm:$0xff]
    %v182 = vld [vmem:[#allocation7 + $0x28] sm:$0xff]
    %v183 = vld [vmem:[#allocation7 + $0x30] sm:$0xff]
    %v184 = vld [vmem:[#allocation7 + $0x38] sm:$0xff]
    %v185 = vld [vmem:[#allocation7 + $0x40] sm:$0xff]
    %v186 = vld [vmem:[#allocation7 + $0x48] sm:$0xff]
    %v187 = vld [vmem:[#allocation7 + $0x50] sm:$0xff]
    %v188 = vld [vmem:[#allocation7 + $0x58] sm:$0xff]
    %v189 = vld [vmem:[#allocation7 + $0x60] sm:$0xff]
    %v190 = vld [vmem:[#allocation7 + $0x68] sm:$0xff]
    %v191 = vld [vmem:[#allocation7 + $0x70] sm:$0xff]
    %v192 = vld [vmem:[#allocation7 + $0x78] sm:$0xff]
    %v193 = vld [vmem:[#allocation7 + $0x80] sm:$0xff]
    %v194 = vld [vmem:[#allocation7 + $0x88] sm:$0xff]
    %v195 = vld [vmem:[#allocation7 + $0x90] sm:$0xff]
    %v196 = vld [vmem:[#allocation7 + $0x98] sm:$0xff]
    %v197 = vld [vmem:[#allocation7 + $0xa0] sm:$0xff]
    %v198 = vld [vmem:[#allocation7 + $0xa8] sm:$0xff]
    %v199 = vld [vmem:[#allocation7 + $0xb0] sm:$0xff]
    %v200 = vld [vmem:[#allocation7 + $0xb8] sm:$0xff]
    %v201 = vld [vmem:[#allocation7 + $0xc0] sm:$0xff]
    %v202 = vld [vmem:[#allocation7 + $0xc8] sm:$0xff]
    %v203 = vld [vmem:[#allocation7 + $0xd0] sm:$0xff]
    %v204 = vld [vmem:[#allocation7 + $0xd8] sm:$0xff]
    %v205 = vld [vmem:[#allocation7 + $0xe0] sm:$0xff]
    %v206 = vld [vmem:[#allocation7 + $0xe8] sm:$0xff]
    %v207 = vld [vmem:[#allocation7 + $0xf0] sm:$0xff]
    %v208 = vld [vmem:[#allocation7 + $0xf8] sm:$0xff]
    %v209 = vld [vmem:[%s4] sm:$0x3]
    %v211 = vlaneseq
    %v212 = vshrl.u32 %v211, 7
    %v213 = vsub.s32 0, %v212
    %v214 = vrot.slane %v209, %v213
    %v215 = vlaneseq
    %v216 = vshrl.u32 %v215, 7
    %v217 = vsub.s32 1, %v216
    %v218 = vrot.slane %v209, %v217
    %v253 = vunpack.c.l.b16 %v177
    %v254 = vunpack.c.h.b16 %v177
    %v255 = vunpack.c.l.b16 %v178
    %v256 = vunpack.c.h.b16 %v178
    %v257 = vunpack.c.l.b16 %v179
    %v258 = vunpack.c.h.b16 %v179
    %v259 = vunpack.c.l.b16 %v180
    %v260 = vunpack.c.h.b16 %v180
    %v261 = vunpack.c.l.b16 %v181
    %v262 = vunpack.c.h.b16 %v181
    %v263 = vunpack.c.l.b16 %v182
    %v264 = vunpack.c.h.b16 %v182
    %v265 = vunpack.c.l.b16 %v183
    %v266 = vunpack.c.h.b16 %v183
    %v267 = vunpack.c.l.b16 %v184
    %v268 = vunpack.c.h.b16 %v184
    %v269 = vunpack.c.l.b16 %v185
    %v270 = vunpack.c.h.b16 %v185
    %v271 = vunpack.c.l.b16 %v186
    %v272 = vunpack.c.h.b16 %v186
    %v273 = vunpack.c.l.b16 %v187
    %v274 = vunpack.c.h.b16 %v187
    %v275 = vunpack.c.l.b16 %v188
    %v276 = vunpack.c.h.b16 %v188
    %v277 = vunpack.c.l.b16 %v189
    %v278 = vunpack.c.h.b16 %v189
    %v279 = vunpack.c.l.b16 %v190
    %v280 = vunpack.c.h.b16 %v190
    %v281 = vunpack.c.l.b16 %v191
    %v282 = vunpack.c.h.b16 %v191
    %v283 = vunpack.c.l.b16 %v192
    %v284 = vunpack.c.h.b16 %v192
    %v285 = vunpack.c.l.b16 %v193
    %v286 = vunpack.c.h.b16 %v193
    %v287 = vunpack.c.l.b16 %v194
    %v288 = vunpack.c.h.b16 %v194
    %v289 = vunpack.c.l.b16 %v195
    %v290 = vunpack.c.h.b16 %v195
    %v291 = vunpack.c.l.b16 %v196
    %v292 = vunpack.c.h.b16 %v196
    %v293 = vunpack.c.l.b16 %v197
    %v294 = vunpack.c.h.b16 %v197
    %v295 = vunpack.c.l.b16 %v198
    %v296 = vunpack.c.h.b16 %v198
    %v297 = vunpack.c.l.b16 %v199
    %v298 = vunpack.c.h.b16 %v199
    %v299 = vunpack.c.l.b16 %v200
    %v300 = vunpack.c.h.b16 %v200
    %v301 = vunpack.c.l.b16 %v201
    %v302 = vunpack.c.h.b16 %v201
    %v303 = vunpack.c.l.b16 %v202
    %v304 = vunpack.c.h.b16 %v202
    %v305 = vunpack.c.l.b16 %v203
    %v306 = vunpack.c.h.b16 %v203
    %v307 = vunpack.c.l.b16 %v204
    %v308 = vunpack.c.h.b16 %v204
    %v309 = vunpack.c.l.b16 %v205
    %v310 = vunpack.c.h.b16 %v205
    %v311 = vunpack.c.l.b16 %v206
    %v312 = vunpack.c.h.b16 %v206
    %v313 = vunpack.c.l.b16 %v207
    %v314 = vunpack.c.h.b16 %v207
    %v315 = vunpack.c.l.b16 %v208
    %v316 = vunpack.c.h.b16 %v208
    %v317 = vpack.c.b16 %v255, %v253
    %v318 = vpack.c.b16 %v256, %v254
    %v319 = vpack.c.b16 %v259, %v257
    %v320 = vpack.c.b16 %v260, %v258
    %v321 = vpack.c.b16 %v263, %v261
    %v322 = vpack.c.b16 %v264, %v262
    %v323 = vpack.c.b16 %v267, %v265
    %v324 = vpack.c.b16 %v268, %v266
    %v325 = vpack.c.b16 %v271, %v269
    %v326 = vpack.c.b16 %v272, %v270
    %v327 = vpack.c.b16 %v275, %v273
    %v328 = vpack.c.b16 %v276, %v274
    %v329 = vpack.c.b16 %v279, %v277
    %v330 = vpack.c.b16 %v280, %v278
    %v331 = vpack.c.b16 %v283, %v281
    %v332 = vpack.c.b16 %v284, %v282
    %v333 = vpack.c.b16 %v287, %v285
    %v334 = vpack.c.b16 %v288, %v286
    %v335 = vpack.c.b16 %v291, %v289
    %v336 = vpack.c.b16 %v292, %v290
    %v337 = vpack.c.b16 %v295, %v293
    %v338 = vpack.c.b16 %v296, %v294
    %v339 = vpack.c.b16 %v299, %v297
    %v340 = vpack.c.b16 %v300, %v298
    %v341 = vpack.c.b16 %v303, %v301
    %v342 = vpack.c.b16 %v304, %v302
    %v343 = vpack.c.b16 %v307, %v305
    %v344 = vpack.c.b16 %v308, %v306
    %v345 = vpack.c.b16 %v311, %v309
    %v346 = vpack.c.b16 %v312, %v310
    %v347 = vpack.c.b16 %v315, %v313
    %v348 = vpack.c.b16 %v316, %v314
    %381 = vmatprep.subr.bf16.mxu0 %v318
    %382 = vmatpush1.bf16.msra.mxu0 %v317
    %383 = vmatprep.subr.bf16.mxu0 %v320
    %384 = vmatpush1.bf16.msra.mxu0 %v319
    %385 = vmatprep.subr.bf16.mxu0 %v322
    %386 = vmatpush1.bf16.msra.mxu0 %v321
    %387 = vmatprep.subr.bf16.mxu0 %v324
    %388 = vmatpush1.bf16.msra.mxu0 %v323
    %389 = vmatprep.subr.bf16.mxu0 %v326
    %390 = vmatpush1.bf16.msra.mxu0 %v325
    %391 = vmatprep.subr.bf16.mxu0 %v328
    %392 = vmatpush1.bf16.msra.mxu0 %v327
    %393 = vmatprep.subr.bf16.mxu0 %v330
    %394 = vmatpush1.bf16.msra.mxu0 %v329
    %395 = vmatprep.subr.bf16.mxu0 %v332
    %396 = vmatpush1.bf16.msra.mxu0 %v331
    %397 = vmatprep.subr.bf16.mxu0 %v334
    %398 = vmatpush1.bf16.msra.mxu0 %v333
    %399 = vmatprep.subr.bf16.mxu0 %v336
    %400 = vmatpush1.bf16.msra.mxu0 %v335
    %401 = vmatprep.subr.bf16.mxu0 %v338
    %402 = vmatpush1.bf16.msra.mxu0 %v337
    %403 = vmatprep.subr.bf16.mxu0 %v340
    %404 = vmatpush1.bf16.msra.mxu0 %v339
    %405 = vmatprep.subr.bf16.mxu0 %v342
    %406 = vmatpush1.bf16.msra.mxu0 %v341
    %407 = vmatprep.subr.bf16.mxu0 %v344
    %408 = vmatpush1.bf16.msra.mxu0 %v343
    %409 = vmatprep.subr.bf16.mxu0 %v346
    %410 = vmatpush1.bf16.msra.mxu0 %v345
    %411 = vmatprep.subr.bf16.mxu0 %v348
    %412 = vmatpush1.bf16.msra.mxu0 %v347
    %413 = vmatprep.mubr.bf16.mxu0 %v176
    %414 = vmatmul.mubr.bf16.gmra.mrb[0].mxu0 %v175
    %v415 = vpop.f32.mrb[0].mxu0
    %v416 = vadd.f32 %v214, %v415
    %v417 = vpop.f32.mrb[0].mxu0
    %v418 = vadd.f32 %v218, %v417
    %v419 = vpop.f32.mrb[0].mxu0
    %v420 = vpop.f32.mrb[0].mxu0
    %421 = vdwg.mxu0
    %v422 = vmax.f32 %v416, 0.0
    %v423 = vmax.f32 %v418, 0.0
    %v424 = vpack.c.bf16 %v422, %v422
    %v425 = vpack.c.bf16 %v423, %v423
    %v426 = vld [vmem:[#allocation8] sm:$0xf]
    %v427 = vld [vmem:[#allocation8 + $0x4] sm:$0xf]
    %v428 = vld [vmem:[#allocation8 + $0x8] sm:$0xf]
    %v429 = vld [vmem:[#allocation8 + $0xc] sm:$0xf]
    %v430 = vld [vmem:[#allocation8 + $0x10] sm:$0xf]
    %v431 = vld [vmem:[#allocation8 + $0x14] sm:$0xf]
    %v432 = vld [vmem:[#allocation8 + $0x18] sm:$0xf]
    %v433 = vld [vmem:[#allocation8 + $0x1c] sm:$0xf]
    %v434 = vld [vmem:[#allocation8 + $0x20] sm:$0xf]
    %v435 = vld [vmem:[#allocation8 + $0x24] sm:$0xf]
    %v436 = vld [vmem:[#allocation8 + $0x28] sm:$0xf]
    %v437 = vld [vmem:[#allocation8 + $0x2c] sm:$0xf]
    %v438 = vld [vmem:[#allocation8 + $0x30] sm:$0xf]
    %v439 = vld [vmem:[#allocation8 + $0x34] sm:$0xf]
    %v440 = vld [vmem:[#allocation8 + $0x38] sm:$0xf]
    %v441 = vld [vmem:[#allocation8 + $0x3c] sm:$0xf]
    %v442 = vld [vmem:[#allocation8 + $0x40] sm:$0xf]
    %v443 = vld [vmem:[#allocation8 + $0x44] sm:$0xf]
    %v444 = vld [vmem:[#allocation8 + $0x48] sm:$0xf]
    %v445 = vld [vmem:[#allocation8 + $0x4c] sm:$0xf]
    %v446 = vld [vmem:[#allocation8 + $0x50] sm:$0xf]
    %v447 = vld [vmem:[#allocation8 + $0x54] sm:$0xf]
    %v448 = vld [vmem:[#allocation8 + $0x58] sm:$0xf]
    %v449 = vld [vmem:[#allocation8 + $0x5c] sm:$0xf]
    %v450 = vld [vmem:[#allocation8 + $0x60] sm:$0xf]
    %v451 = vld [vmem:[#allocation8 + $0x64] sm:$0xf]
    %v452 = vld [vmem:[#allocation8 + $0x68] sm:$0xf]
    %v453 = vld [vmem:[#allocation8 + $0x6c] sm:$0xf]
    %v454 = vld [vmem:[#allocation8 + $0x70] sm:$0xf]
    %v455 = vld [vmem:[#allocation8 + $0x74] sm:$0xf]
    %v456 = vld [vmem:[#allocation8 + $0x78] sm:$0xf]
    %v457 = vld [vmem:[#allocation8 + $0x7c] sm:$0xf]
    %v458 = vld [vmem:[%s6] sm:$0x1]
    %v460 = vlaneseq
    %v461 = vshrl.u32 %v460, 7
    %v462 = vsub.s32 0, %v461
    %v463 = vrot.slane %v458, %v462
    %v497 = vunpack.c.l.b16 %v426
    %v498 = vunpack.c.l.b16 %v427
    %v499 = vunpack.c.l.b16 %v428
    %v500 = vunpack.c.l.b16 %v429
    %v501 = vunpack.c.l.b16 %v430
    %v502 = vunpack.c.l.b16 %v431
    %v503 = vunpack.c.l.b16 %v432
    %v504 = vunpack.c.l.b16 %v433
    %v505 = vunpack.c.l.b16 %v434
    %v506 = vunpack.c.l.b16 %v435
    %v507 = vunpack.c.l.b16 %v436
    %v508 = vunpack.c.l.b16 %v437
    %v509 = vunpack.c.l.b16 %v438
    %v510 = vunpack.c.l.b16 %v439
    %v511 = vunpack.c.l.b16 %v440
    %v512 = vunpack.c.l.b16 %v441
    %v513 = vunpack.c.l.b16 %v442
    %v514 = vunpack.c.l.b16 %v443
    %v515 = vunpack.c.l.b16 %v444
    %v516 = vunpack.c.l.b16 %v445
    %v517 = vunpack.c.l.b16 %v446
    %v518 = vunpack.c.l.b16 %v447
    %v519 = vunpack.c.l.b16 %v448
    %v520 = vunpack.c.l.b16 %v449
    %v521 = vunpack.c.l.b16 %v450
    %v522 = vunpack.c.l.b16 %v451
    %v523 = vunpack.c.l.b16 %v452
    %v524 = vunpack.c.l.b16 %v453
    %v525 = vunpack.c.l.b16 %v454
    %v526 = vunpack.c.l.b16 %v455
    %v527 = vunpack.c.l.b16 %v456
    %v528 = vunpack.c.l.b16 %v457
    %v529 = vpack.c.b16 %v498, %v497
    %v530 = vpack.c.b16 %v500, %v499
    %v531 = vpack.c.b16 %v502, %v501
    %v532 = vpack.c.b16 %v504, %v503
    %v533 = vpack.c.b16 %v506, %v505
    %v534 = vpack.c.b16 %v508, %v507
    %v535 = vpack.c.b16 %v510, %v509
    %v536 = vpack.c.b16 %v512, %v511
    %v537 = vpack.c.b16 %v514, %v513
    %v538 = vpack.c.b16 %v516, %v515
    %v539 = vpack.c.b16 %v518, %v517
    %v540 = vpack.c.b16 %v520, %v519
    %v541 = vpack.c.b16 %v522, %v521
    %v542 = vpack.c.b16 %v524, %v523
    %v543 = vpack.c.b16 %v526, %v525
    %v544 = vpack.c.b16 %v528, %v527
    %561 = vmatprep.subr.bf16.mxu0 0
    %562 = vmatpush1.bf16.msra.mxu0 %v529
    %563 = vmatprep.subr.bf16.mxu0 0
    %564 = vmatpush1.bf16.msra.mxu0 %v530
    %565 = vmatprep.subr.bf16.mxu0 0
    %566 = vmatpush1.bf16.msra.mxu0 %v531
    %567 = vmatprep.subr.bf16.mxu0 0
    %568 = vmatpush1.bf16.msra.mxu0 %v532
    %569 = vmatprep.subr.bf16.mxu0 0
    %570 = vmatpush1.bf16.msra.mxu0 %v533
    %571 = vmatprep.subr.bf16.mxu0 0
    %572 = vmatpush1.bf16.msra.mxu0 %v534
    %573 = vmatprep.subr.bf16.mxu0 0
    %574 = vmatpush1.bf16.msra.mxu0 %v535
    %575 = vmatprep.subr.bf16.mxu0 0
    %576 = vmatpush1.bf16.msra.mxu0 %v536
    %577 = vmatprep.subr.bf16.mxu0 0
    %578 = vmatpush1.bf16.msra.mxu0 %v537
    %579 = vmatprep.subr.bf16.mxu0 0
    %580 = vmatpush1.bf16.msra.mxu0 %v538
    %581 = vmatprep.subr.bf16.mxu0 0
    %582 = vmatpush1.bf16.msra.mxu0 %v539
    %583 = vmatprep.subr.bf16.mxu0 0
    %584 = vmatpush1.bf16.msra.mxu0 %v540
    %585 = vmatprep.subr.bf16.mxu0 0
    %586 = vmatpush1.bf16.msra.mxu0 %v541
    %587 = vmatprep.subr.bf16.mxu0 0
    %588 = vmatpush1.bf16.msra.mxu0 %v542
    %589 = vmatprep.subr.bf16.mxu0 0
    %590 = vmatpush1.bf16.msra.mxu0 %v543
    %591 = vmatprep.subr.bf16.mxu0 0
    %592 = vmatpush1.bf16.msra.mxu0 %v544
    %593 = vmatprep.mubr.bf16.mxu0 %v425
    %594 = vmatmul.mubr.bf16.gmra.mrb[0].mxu0 %v424
    %v595 = vpop.f32.mrb[0].mxu0
    %v596 = vadd.f32 %v463, %v595
    %v597 = vpop.f32.mrb[0].mxu0
    %v598 = vpop.f32.mrb[0].mxu0
    %v599 = vpop.f32.mrb[0].mxu0
    %600 = vdwg.mxu0
    %v601 = vtanh.pop %v596
    %602 = vst [vmem:[#allocation10] sm:$0xff] %v601
    // Predicated region
    $region46: #{tpu_custom_call.1} parent=1 // pred_check
      _
    $region47: #{tpu_custom_call.1} parent=1 // pred_check_branch
      %604 = sbr.rel (0) target = $region49
    $region48: #{tpu_custom_call.1} parent=1 // pred_region
      %s606 = ssub.s32 128, 128
      %607 = vsyncadd [#allocation4], %s606
      %s609 = sshll.u32 [#allocation10], 4
      %s610 = int_to_ptr.vmem [resolvable:$true] %s609
      %612 = dma.vmem_to_hbm [thread:$0]  %s610, 128, %s7, [#allocation4]
    $region49: #{tpu_custom_call.1} parent=1 // pred_fallthru
      _
    // Predicated region
    $region50: #{tpu_custom_call.1} parent=1 // pred_check
      _
    $region51: #{tpu_custom_call.1} parent=1 // pred_check_branch
      %614 = sbr.rel (0) target = $region53
    $region52: #{tpu_custom_call.1} parent=1 // pred_region
      %615 = dma.done [#allocation4], 128
    $region53: #{tpu_custom_call.1} parent=1 // pred_fallthru
      _
    %616 = vsyncpa [#allocation3], 1
    %617 = vsyncpa [#allocation6], 1
    %618 = vsyncpa [#allocation9], 1
    %619 = vsyncpa [#allocation4], 1

</llo_original>
